<compile_context>
chip_gen: v7x
topology: tpu7x:2x2x1
jax: 0.10.0
libtpu: 0.0.40
codegen_flags: <defaults>
</compile_context>

<pallas_src>
import jax
import jax.numpy as jnp
from jax.experimental import pallas as pl
from jax.experimental.pallas import tpu as pltpu


_SMALL_O_THRESHOLD = 8   # at/below this, route the contraction through VPU+XLU


# ---------------------------------------------------------------------------
# Kernels
# ---------------------------------------------------------------------------
def _matvec_kernel(x_ref, w_ref, b_ref, o_ref):
    """Small-output-dim path (typical logistic regression, output_dim == 1).

    x_ref: [tm, D]  VMEM   batch tile, features on lanes
    w_ref: [O,  D]  VMEM   full weight, native torch [out, in] layout
    b_ref: [O]      SMEM   bias scalars
    o_ref: [O, tm]  VMEM   lane-dense output: batch on the lane axis
    """
    x = x_ref[...]                                   # [tm, D] f32 (read once)
    out_dim = w_ref.shape[0]
    for o in range(out_dim):                         # static unroll; O is tiny
        w_row = w_ref[o, :]                          # [D]
        # VPU multiply + XLU lane-reduce — no MXU for a matvec.
        z = jnp.sum(x * w_row[None, :], axis=-1)     # [tm]
        z = z + b_ref[o]                             # scalar bias from SMEM
        o_ref[o, :] = jax.nn.sigmoid(z).astype(o_ref.dtype)


def _mxu_kernel(x_ref, w_ref, b_ref, o_ref):
    """General path (output_dim large enough to feed the MXU).

    x_ref: [tm, D], w_ref: [tn, D] (native layout; contracted on its last dim
    so no host-side transpose), b_ref: [1, tn], o_ref: [tm, tn].
    """
    z = jax.lax.dot_general(
        x_ref[...], w_ref[...],
        dimension_numbers=(((1,), (1,)), ((), ())),   # x @ w.T on the MXU
        preferred_element_type=jnp.float32)
    z = z + b_ref[...]                                # broadcast [1, tn]
    o_ref[...] = jax.nn.sigmoid(z).astype(o_ref.dtype)


# ---------------------------------------------------------------------------
# Wrappers
# ---------------------------------------------------------------------------
def _pick_batch_tile(batch, feat_dim, *, max_tile=512, target_x_bytes=2 << 20):
    """Largest batch tile keeping the f32 [tm, D] x-block under ~2 MiB so the
    double-buffered pipeline fits the scoped-VMEM default on v5e/v6e/v7x."""
    tm = min(max_tile, max(128, target_x_bytes // (feat_dim * 4)))
    tm = max(128, (tm // 128) * 128)   # output block's lane dim must be %128
    return batch if batch <= tm else tm


def _forward_small_o(x, weight, bias):
    B, D = x.shape
    O = weight.shape[0]
    tm = _pick_batch_tile(B, D)
    grid = (pl.cdiv(B, tm),)

    out_t = pl.pallas_call(
        _matvec_kernel,
        out_shape=jax.ShapeDtypeStruct((O, B), jnp.float32),   # batch on lanes
        grid_spec=pltpu.PrefetchScalarGridSpec(
            num_scalar_prefetch=0,
            grid=grid,
            in_specs=[
                pl.BlockSpec((tm, D), lambda i: (i, 0)),             # x tile
                pl.BlockSpec((O, D), lambda i: (0, 0)),              # weight
                pl.BlockSpec(memory_space=pltpu.MemorySpace.SMEM),   # bias
            ],
            out_specs=pl.BlockSpec((O, tm), lambda i: (0, i)),
        ),
        compiler_params=pltpu.CompilerParams(
            dimension_semantics=("parallel",),   # megacore-shard batch tiles
        ),
    )(x, weight, bias)
    # (O, B) -> (B, O); for O == 1 this is effectively a metadata reshape.
    return out_t.T


def _forward_mxu(x, weight, bias):
    # TODO(synk): add a K (input_dim) grid axis + f32 VMEM accumulator if
    # input_dim grows beyond a few thousand (here D is kept whole per block).
    B, D = x.shape
    O = weight.shape[0]
    tm = B if B <= 128 else 128
    tn = O if O <= 128 else 128
    grid = (pl.cdiv(B, tm), pl.cdiv(O, tn))
    bias2 = bias.reshape(1, O)

    return pl.pallas_call(
        _mxu_kernel,
        out_shape=jax.ShapeDtypeStruct((B, O), jnp.float32),
        grid_spec=pltpu.PrefetchScalarGridSpec(
            num_scalar_prefetch=0,
            grid=grid,
            in_specs=[
                pl.BlockSpec((tm, D), lambda i, j: (i, 0)),
                pl.BlockSpec((tn, D), lambda i, j: (j, 0)),
                pl.BlockSpec((1, tn), lambda i, j: (0, j)),
            ],
            out_specs=pl.BlockSpec((tm, tn), lambda i, j: (i, j)),
        ),
        compiler_params=pltpu.CompilerParams(
            dimension_semantics=("parallel", "parallel"),
        ),
    )(x, weight, bias2)


@jax.jit
def logistic_regression_forward(x, weight, bias):
    """x: [B, D] f32; weight: [O, D] (torch layout); bias: [O]. Returns [B, O]."""
    O = weight.shape[0]
    if O <= _SMALL_O_THRESHOLD:
        return _forward_small_o(x, weight, bias)
    return _forward_mxu(x, weight, bias)


# ---------------------------------------------------------------------------
# Self-test
# ---------------------------------------------------------------------------
def _reference(x, weight, bias):
    z = jnp.dot(x, weight.T, precision=jax.lax.Precision.HIGHEST) + bias
    return jax.nn.sigmoid(z)


if __name__ == "__main__":
    master_key = jax.random.PRNGKey(0)

    def make_case(key, batch, input_dim, output_dim):
        kx, kw, kb = jax.random.split(key, 3)
        bound = 1.0 / (input_dim ** 0.5)    # torch.nn.Linear default init range
        x = jax.random.normal(kx, (batch, input_dim), dtype=jnp.float32)
        w = jax.random.uniform(kw, (output_dim, input_dim),
                               minval=-bound, maxval=bound, dtype=jnp.float32)
        b = jax.random.uniform(kb, (output_dim,),
                               minval=-bound, maxval=bound, dtype=jnp.float32)
        return x, w, b

    cases = [
        # (batch, input_dim, output_dim, atol)
        (8,    32,  1,   1e-5),   # module default: single-logit, single block
        (1024, 256, 1,   1e-5),   # tiled VPU path, grid > 1, megacore-parallel
        (256,  128, 4,   1e-5),   # small multi-logit head, still VPU path
        (256,  128, 256, 2e-3),   # wide-output MXU path
    ]
    keys = jax.random.split(master_key, len(cases))
    for case_key, (batch, input_dim, output_dim, atol) in zip(keys, cases):
        x, w, b = make_case(case_key, batch, input_dim, output_dim)
        out = jax.block_until_ready(logistic_regression_forward(x, w, b))
        ref = _reference(x, w, b)
        assert out.shape == (batch, output_dim), (out.shape, (batch, output_dim))
        assert jnp.allclose(out, ref, atol=atol, rtol=0.0), (
            f"mismatch at shape {(batch, input_dim, output_dim)}: "
            f"max abs err {jnp.max(jnp.abs(out - ref))}")

    print("KERNEL_OK")
</pallas_src>

<mosaic_0001>
module attributes {stable_mosaic.version = 11 : i64} {
  func.func @_matvec_kernel(%arg0: i32, %arg1: memref<8x32xf32, #tpu.memory_space<vmem>>, %arg2: memref<1x32xf32, #tpu.memory_space<vmem>>, %arg3: memref<1xf32, #tpu.memory_space<smem>>, %arg4: memref<1x8xf32, #tpu.memory_space<vmem>>) attributes {dimension_semantics = [#tpu.dimension_semantics<parallel>], iteration_bounds = array<i64: 1>, scalar_prefetch = 0 : i64, scratch_operands = 0 : i64, tpu.core_type = #tpu.core_type<tc>, window_params = [{transform_indices = @transform_0, window_bounds = array<i64: 8, 32>}, {pipeline_mode = #tpu.pipeline_mode<synchronous>, transform_indices = @transform_1, window_bounds = array<i64: 1, 32>}, {transform_indices = @transform_2, window_bounds = array<i64: 1>}, {transform_indices = @transform_3, window_bounds = array<i64: 1, 8>}]} {
    %c0 = arith.constant 0 : index
    %c0_0 = arith.constant 0 : index
    %0 = vector.load %arg1[%c0, %c0_0] : memref<8x32xf32, #tpu.memory_space<vmem>>, vector<8x32xf32>
    %c0_1 = arith.constant 0 : index
    %c0_2 = arith.constant 0 : index
    %1 = vector.load %arg2[%c0_1, %c0_2] : memref<1x32xf32, #tpu.memory_space<vmem>>, vector<1x32xf32>
    %2 = vector.shape_cast %1 : vector<1x32xf32> to vector<32xf32>
    %3 = vector.shape_cast %2 : vector<32xf32> to vector<1x32xf32>
    %4 = vector.broadcast %3 : vector<1x32xf32> to vector<8x32xf32>
    %5 = arith.mulf %0, %4 : vector<8x32xf32>
    %cst = arith.constant dense<0.000000e+00> : vector<8xf32>
    %6 = vector.multi_reduction <add>, %5, %cst [1] : vector<8x32xf32> to vector<8xf32>
    %c0_3 = arith.constant 0 : index
    %7 = memref.load %arg3[%c0_3] : memref<1xf32, #tpu.memory_space<smem>>
    %8 = vector.broadcast %7 : f32 to vector<8xf32>
    %9 = arith.addf %6, %8 : vector<8xf32>
    %10 = arith.negf %9 : vector<8xf32>
    %11 = math.exp %10 : vector<8xf32>
    %cst_4 = arith.constant 1.000000e+00 : f32
    %12 = vector.broadcast %cst_4 : f32 to vector<8xf32>
    %13 = arith.addf %12, %11 : vector<8xf32>
    %14 = arith.divf %12, %13 : vector<8xf32>
    %c0_5 = arith.constant 0 : index
    %c0_6 = arith.constant 0 : index
    %15 = vector.load %arg4[%c0_5, %c0_6] : memref<1x8xf32, #tpu.memory_space<vmem>>, vector<1x8xf32>
    %16 = vector.shape_cast %15 : vector<1x8xf32> to vector<8xf32>
    %17 = vector.shape_cast %14 : vector<8xf32> to vector<1x8xf32>
    tpu.vector_store %arg4[%c0_5, %c0_6], %17 {strides = array<i32>} : memref<1x8xf32, #tpu.memory_space<vmem>>, vector<1x8xf32>,
    return
  }
  func.func @transform_0(%arg0: i32) -> (i32, i32) {
    %c0_i32 = arith.constant 0 : i32
    %c0_i32_0 = arith.constant 0 : i32
    return %arg0, %c0_i32 : i32, i32
  }
  func.func @transform_1(%arg0: i32) -> (i32, i32) {
    %c0_i32 = arith.constant 0 : i32
    %c0_i32_0 = arith.constant 0 : i32
    %c0_i32_1 = arith.constant 0 : i32
    return %c0_i32, %c0_i32_0 : i32, i32
  }
  func.func @transform_2(%arg0: i32) -> i32 {
    %c0_i32 = arith.constant 0 : i32
    %c0_i32_0 = arith.constant 0 : i32
    return %c0_i32 : i32
  }
  func.func @transform_3(%arg0: i32) -> (i32, i32) {
    %c0_i32 = arith.constant 0 : i32
    %c0_i32_0 = arith.constant 0 : i32
    return %c0_i32, %arg0 : i32, i32
  }
}

</mosaic_0001>

<llo_original>
// kernel: logistic_regression_forward.1
$region0: #{logistic_regression_forward.1}
  #allocation0 [shape = 'u32[]', space=smem, size = 0x4, offset = 0x4, fixed_abs, tag = 'smem constant byte address 0x4 - core index']
  #allocation1 [shape = 'u32[144,128]{1,0:T(1,128)}', space=vmem, size = 0x12000, scoped, tag = 'internal scratch']
  #allocation2 [shape = 'f32[1]{0:T(128)S(6)}', space=smem, size = 0x200, scoped, tag = 'scoped memory for logistic_regression_forward.1']
  %s0 = inlined_call_operand.hbm [shape: f32[8,32], index: 0, kind: input, shape index: {}]
  %s1 = inlined_call_operand.vmem [shape: f32[1,32], index: 1, kind: input, shape index: {}]
  %s2 = inlined_call_operand.<no memory space> [shape: f32[1], index: 2, kind: input, shape index: {}]
  %s3 = inlined_call_operand.hbm [shape: f32[1,8], index: 3, kind: output, shape index: {}]
  %s4 = sld [smem:[#allocation0]]
  $region26: #{logistic_regression_forward.1} parent=0
    _
  %s6 = ssub.s32 1, %s4
  %s7 = scalar_select 0, %s6, %s4
  %8 = sst [smem:[#allocation2]] %s2
  $region1: #{logistic_regression_forward.1} parent=0
    #allocation3 [shape = 'u8[4096]{0}', space=vmem, size = 0x1000, scoped, tag = 'input window, operand 0, single buffered']
    #allocation4 [shape = 's32[1]{0}', space=sflag, size = 0x4, scoped, tag = 'scoped memory for logistic_regression_forward.1']
    #allocation5 [shape = 's32[1]{0}', space=sflag, size = 0x4, scoped, tag = 'scoped memory for logistic_regression_forward.1']
    #allocation6 [shape = 'u8[512]{0}', space=vmem, size = 0x400, scoped, tag = 'output window, operand 0, single buffered']
    %9 = vsyncpa [#allocation4], 0
    %10 = vsyncpa [#allocation5], 0
    // Predicated region
    $region2: #{logistic_regression_forward.1} parent=1 // pred_check
      _
    $region3: #{logistic_regression_forward.1} parent=1 // pred_check_branch
      %12 = sbr.rel (0) target = $region5
    $region4: #{logistic_regression_forward.1} parent=1 // pred_region
      %s14 = ssub.s32 128, 128
      %15 = vsyncadd [#allocation4], %s14
      %s17 = sshll.u32 [#allocation3], 4
      %s18 = int_to_ptr.vmem [resolvable:$true] %s17
      %20 = dma.hbm_to_vmem [thread:$0]  %s0, 128, %s18, [#allocation4]
    $region5: #{logistic_regression_forward.1} parent=1 // pred_fallthru
      _
    // Predicated region
    $region6: #{logistic_regression_forward.1} parent=1 // pred_check
      _
    $region7: #{logistic_regression_forward.1} parent=1 // pred_check_branch
      %22 = sbr.rel (0) target = $region9
    $region8: #{logistic_regression_forward.1} parent=1 // pred_region
      _
    $region9: #{logistic_regression_forward.1} parent=1 // pred_fallthru
      _
    // Predicated region
    $region10: #{logistic_regression_forward.1} parent=1 // pred_check
      _
    $region11: #{logistic_regression_forward.1} parent=1 // pred_check_branch
      %24 = sbr.rel (0) target = $region13
    $region12: #{logistic_regression_forward.1} parent=1 // pred_region
      _
    $region13: #{logistic_regression_forward.1} parent=1 // pred_fallthru
      _
    // Predicated region
    $region14: #{logistic_regression_forward.1} parent=1 // pred_check
      _
    $region15: #{logistic_regression_forward.1} parent=1 // pred_check_branch
      %26 = sbr.rel (0) target = $region17
    $region16: #{logistic_regression_forward.1} parent=1 // pred_region
      %27 = dma.done [#allocation4], 128
    $region17: #{logistic_regression_forward.1} parent=1 // pred_fallthru
      _
    %v28 = vld [vmem:[#allocation3] sm:$0xff]
    %v29 = vld [vmem:[%s1] sm:$0x1]
    %v31 = vlaneseq
    %v32 = vshrl.u32 %v31, 7
    %v33 = vsub.s32 0, %v32
    %v34 = vrot.slane %v29, %v33
    %v36 = vmul.f32 %v28, %v34
    %vm37 = vcmask 261120
    %v38 = vsel %vm37, %v36, 0.0
    %39 = vadd.xlane.f32.xlu0 %v38
    %v40 = vpop.xlane.xlu0 %39
    %s41 = sld [smem:[#allocation2]]
    %v42 = vstv %s41
    %v43 = vadd.f32 %v40, %v42
    %v44 = vxor.u32 %v43, 2147483648
    %v45 = vmul.f32 %v44, 1.442695
    %v46 = vpow.pop %v45
    %v47 = vadd.f32 %v46, 1.0
    %v48 = vrcp.pop %v47
    %v49 = vmul.f32 1.0, %v48
    %v51 = vlaneseq
    %v52 = vand.u32 %v51, 127
    %v53 = vlaneseq
    %v54 = vshrl.u32 %v53, 7
    %v55 = vsub.s32 %v52, %v54
    %v56 = vrot.slane %v49, %v55
    %vm58 = vcmask 57344
    %59 = vst.msk [vmem:[#allocation6] sm:$0x1] %vm58, %v56
    // Predicated region
    $region18: #{logistic_regression_forward.1} parent=1 // pred_check
      _
    $region19: #{logistic_regression_forward.1} parent=1 // pred_check_branch
      %61 = sbr.rel (0) target = $region21
    $region20: #{logistic_regression_forward.1} parent=1 // pred_region
      %s63 = ssub.s32 16, 16
      %64 = vsyncadd [#allocation5], %s63
      %s66 = sshll.u32 [#allocation6], 4
      %s67 = int_to_ptr.vmem [resolvable:$true] %s66
      %69 = dma.vmem_to_hbm [thread:$0]  %s67, 16, %s3, [#allocation5]
    $region21: #{logistic_regression_forward.1} parent=1 // pred_fallthru
      _
    // Predicated region
    $region22: #{logistic_regression_forward.1} parent=1 // pred_check
      _
    $region23: #{logistic_regression_forward.1} parent=1 // pred_check_branch
      %71 = sbr.rel (0) target = $region25
    $region24: #{logistic_regression_forward.1} parent=1 // pred_region
      %72 = dma.done [#allocation5], 16
    $region25: #{logistic_regression_forward.1} parent=1 // pred_fallthru
      _
    %73 = vsyncpa [#allocation4], 1
    %74 = vsyncpa [#allocation5], 1

</llo_original>
